<compile_context>
chip_gen: v7x
topology: tpu7x:2x2x1
jax: 0.10.0
libtpu: 0.0.40
codegen_flags: <defaults>
</compile_context>

<pallas_src>
import functools

import jax
import jax.numpy as jnp
from jax.experimental import pallas as pl
from jax.experimental.pallas import tpu as pltpu


LANE = 512            # lane-dense last dim (multiple of 128): unmasked vst
MAX_BLOCK_ROWS = 512  # 512 x 512 f32 = 1 MiB per plane per block
MIN_GRID_STEPS = 4    # >= 2 steps per TensorCore on 2-TC chips (v7x)


def _x_solve_kernel(rho_ref, *refs, compute_hth):
    """Elementwise frequency-domain solve on lane-dense (br, LANE) slabs.

    refs (compute_hth=False): ht_re, ht_im, yf_re, yf_im, wf_re, wf_im, hth,
                              xr_out, xi_out
    refs (compute_hth=True):  ht_re, ht_im, yf_re, yf_im, wf_re, wf_im,
                              xr_out, xi_out
    """
    rho = rho_ref[0, 0]

    ht_re = refs[0][...]
    ht_im = refs[1][...]
    yf_re = refs[2][...]
    yf_im = refs[3][...]
    wf_re = refs[4][...]
    wf_im = refs[5][...]
    if compute_hth:
        hth = ht_re * ht_re + ht_im * ht_im      # |Ht|^2, two free VPU muls
        xr_ref, xi_ref = refs[6], refs[7]
    else:
        hth = refs[6][...]
        xr_ref, xi_ref = refs[7], refs[8]

    # rhs = Ht * fft(y) + rho * fft(z - u)   (complex MAC, VPU)
    rhs_re = ht_re * yf_re - ht_im * yf_im + rho * wf_re
    rhs_im = ht_re * yf_im + ht_im * yf_re + rho * wf_im

    # x_f = rhs / (HtH + rho)   (real denominator; exact reciprocal)
    inv_lhs = pl.reciprocal(hth + rho, approx=False)
    xr_ref[...] = rhs_re * inv_lhs
    xi_ref[...] = rhs_im * inv_lhs


def x_update(Ht, y, HtH, z, u, rho, *, hth_is_abs_sq=False):
    """Pallas implementation of X_Update.forward.

    Ht: complex64 (B,C,H,W); HtH, y, z, u: float32 (B,C,H,W); rho: scalar.
    hth_is_abs_sq=True skips the HtH plane and uses |Ht|^2 in-kernel (only
    valid when HtH == |Ht|^2, e.g. Ht = conj(H), HtH = |H|^2).
    Returns float32 (B,C,H,W).
    """
    B, C, H, W = y.shape
    T = B * C * H * W

    # ---- FFT prep (plain JAX glue; z - u fuses into the FFT input) ----------
    y = jnp.asarray(y, jnp.float32)
    z = jnp.asarray(z, jnp.float32)
    u = jnp.asarray(u, jnp.float32)
    yf = jnp.fft.fftn(y, axes=(-2, -1))
    wf = jnp.fft.fftn(z - u, axes=(-2, -1))

    # ---- lane-dense re-layout & block sizing ---------------------------------
    rows = -(-T // LANE)
    if rows <= 8:
        g, br = 1, rows                    # tiny problem: single full-extent block
    else:
        min_steps = min(MIN_GRID_STEPS, -(-rows // 8))   # never force <8-row steps
        g = max(min_steps, -(-rows // MAX_BLOCK_ROWS))
        br = (-(-(-(-rows // g)) // 8)) * 8              # round_up(cdiv(rows, g), 8)
    rows_pad = g * br
    t_pad = rows_pad * LANE

    def plane(a, fill=0.0):
        a = jnp.asarray(a, jnp.float32).reshape(-1)
        if t_pad != T:
            a = jnp.pad(a, (0, t_pad - T), constant_values=fill)
        return a.reshape(rows_pad, LANE)

    # Separate operands (not a stacked slab) so XLA fuses the real/imag/pad
    # producers into each kernel operand — no extra HBM round trip.
    planes = [
        plane(jnp.real(Ht)), plane(jnp.imag(Ht)),
        plane(jnp.real(yf)), plane(jnp.imag(yf)),
        plane(jnp.real(wf)), plane(jnp.imag(wf)),
    ]
    if not hth_is_abs_sq:
        planes.append(plane(HtH, fill=1.0))   # fill=1 keeps padded denom away from 0

    rho_arr = jnp.asarray(rho, jnp.float32).reshape(1, 1)

    plane_spec = pl.BlockSpec((br, LANE), lambda i: (i, 0))
    in_specs = ([pl.BlockSpec(memory_space=pltpu.MemorySpace.SMEM)]
                + [plane_spec] * len(planes))
    out_specs = [plane_spec, plane_spec]

    xr, xi = pl.pallas_call(
        functools.partial(_x_solve_kernel, compute_hth=hth_is_abs_sq),
        out_shape=[jax.ShapeDtypeStruct((rows_pad, LANE), jnp.float32)] * 2,
        grid=(g,),
        in_specs=in_specs,
        out_specs=out_specs,
        compiler_params=pltpu.CompilerParams(
            dimension_semantics=("parallel",),
            vmem_limit_bytes=32 * 1024 * 1024,
        ),
    )(rho_arr, *planes)

    xf_re = xr.reshape(-1)[:T].reshape(B, C, H, W)
    xf_im = xi.reshape(-1)[:T].reshape(B, C, H, W)
    xf = jax.lax.complex(xf_re, xf_im)

    # ---- inverse FFT + ifftshift + .real (plain JAX glue) --------------------
    x = jnp.fft.ifftshift(jnp.fft.ifftn(xf, axes=(-2, -1)), axes=(-2, -1)).real
    return x.astype(jnp.float32)


if __name__ == "__main__":
    key = jax.random.PRNGKey(0)
    k1, k2, k3, k4 = jax.random.split(key, 4)

    B, C, Hh, Ww = 2, 4, 16, 16

    # Deterministic synthetic operator: H = fft(psf), Ht = conj(H), HtH = |H|^2
    psf = jax.random.normal(k1, (B, C, Hh, Ww), jnp.float32)
    Hf = jnp.fft.fftn(psf, axes=(-2, -1))
    Ht = jnp.conj(Hf)                                   # complex64
    HtH = (jnp.abs(Hf) ** 2).astype(jnp.float32)        # real

    y = jax.random.normal(k2, (B, C, Hh, Ww), jnp.float32)
    z = jax.random.normal(k3, (B, C, Hh, Ww), jnp.float32)
    u = jax.random.normal(k4, (B, C, Hh, Ww), jnp.float32)
    rho = 0.5

    # Pure-JAX reference mirroring the PyTorch forward exactly.
    rhs = Ht * jnp.fft.fftn(y, axes=(-2, -1)) + rho * jnp.fft.fftn(z - u, axes=(-2, -1))
    lhs = HtH + rho
    x_ref = jnp.fft.ifftshift(jnp.fft.ifftn(rhs / lhs, axes=(-2, -1)),
                              axes=(-2, -1)).real

    # General path (explicit HtH plane — matches the module's API exactly).
    x = jax.block_until_ready(x_update(Ht, y, HtH, z, u, rho))
    assert x.shape == (B, C, Hh, Ww)
    assert jnp.allclose(x, x_ref, atol=1e-4, rtol=1e-4), "mismatch vs reference"

    # Optimized path (HtH == |Ht|^2 holds for this operator): one fewer plane.
    x2 = jax.block_until_ready(x_update(Ht, y, HtH, z, u, rho, hth_is_abs_sq=True))
    assert jnp.allclose(x2, x_ref, atol=1e-4, rtol=1e-4), "mismatch (abs_sq path)"

    print("KERNEL_OK")
</pallas_src>

<mosaic_0001>
module attributes {stable_mosaic.version = 11 : i64} {
  func.func @_x_solve_kernel(%arg0: i32, %arg1: memref<1x1xf32, #tpu.memory_space<smem>>, %arg2: memref<4x512xf32, #tpu.memory_space<vmem>>, %arg3: memref<4x512xf32, #tpu.memory_space<vmem>>, %arg4: memref<4x512xf32, #tpu.memory_space<vmem>>, %arg5: memref<4x512xf32, #tpu.memory_space<vmem>>, %arg6: memref<4x512xf32, #tpu.memory_space<vmem>>, %arg7: memref<4x512xf32, #tpu.memory_space<vmem>>, %arg8: memref<4x512xf32, #tpu.memory_space<vmem>>, %arg9: memref<4x512xf32, #tpu.memory_space<vmem>>, %arg10: memref<4x512xf32, #tpu.memory_space<vmem>>) attributes {dimension_semantics = [#tpu.dimension_semantics<parallel>], iteration_bounds = array<i64: 1>, scalar_prefetch = 0 : i64, scratch_operands = 0 : i64, tpu.core_type = #tpu.core_type<tc>, window_params = [{transform_indices = @transform_0, window_bounds = array<i64: 1, 1>}, {transform_indices = @transform_1, window_bounds = array<i64: 4, 512>}, {transform_indices = @transform_2, window_bounds = array<i64: 4, 512>}, {transform_indices = @transform_3, window_bounds = array<i64: 4, 512>}, {transform_indices = @transform_4, window_bounds = array<i64: 4, 512>}, {transform_indices = @transform_5, window_bounds = array<i64: 4, 512>}, {transform_indices = @transform_6, window_bounds = array<i64: 4, 512>}, {transform_indices = @transform_7, window_bounds = array<i64: 4, 512>}, {transform_indices = @transform_8, window_bounds = array<i64: 4, 512>}, {transform_indices = @transform_9, window_bounds = array<i64: 4, 512>}]} {
    %c0 = arith.constant 0 : index
    %c0_0 = arith.constant 0 : index
    %0 = memref.load %arg1[%c0, %c0_0] : memref<1x1xf32, #tpu.memory_space<smem>>
    %c0_1 = arith.constant 0 : index
    %c0_2 = arith.constant 0 : index
    %1 = vector.load %arg2[%c0_1, %c0_2] : memref<4x512xf32, #tpu.memory_space<vmem>>, vector<4x512xf32>
    %c0_3 = arith.constant 0 : index
    %c0_4 = arith.constant 0 : index
    %2 = vector.load %arg3[%c0_3, %c0_4] : memref<4x512xf32, #tpu.memory_space<vmem>>, vector<4x512xf32>
    %c0_5 = arith.constant 0 : index
    %c0_6 = arith.constant 0 : index
    %3 = vector.load %arg4[%c0_5, %c0_6] : memref<4x512xf32, #tpu.memory_space<vmem>>, vector<4x512xf32>
    %c0_7 = arith.constant 0 : index
    %c0_8 = arith.constant 0 : index
    %4 = vector.load %arg5[%c0_7, %c0_8] : memref<4x512xf32, #tpu.memory_space<vmem>>, vector<4x512xf32>
    %c0_9 = arith.constant 0 : index
    %c0_10 = arith.constant 0 : index
    %5 = vector.load %arg6[%c0_9, %c0_10] : memref<4x512xf32, #tpu.memory_space<vmem>>, vector<4x512xf32>
    %c0_11 = arith.constant 0 : index
    %c0_12 = arith.constant 0 : index
    %6 = vector.load %arg7[%c0_11, %c0_12] : memref<4x512xf32, #tpu.memory_space<vmem>>, vector<4x512xf32>
    %c0_13 = arith.constant 0 : index
    %c0_14 = arith.constant 0 : index
    %7 = vector.load %arg8[%c0_13, %c0_14] : memref<4x512xf32, #tpu.memory_space<vmem>>, vector<4x512xf32>
    %8 = arith.mulf %1, %3 : vector<4x512xf32>
    %9 = arith.mulf %2, %4 : vector<4x512xf32>
    %10 = arith.subf %8, %9 : vector<4x512xf32>
    %11 = vector.broadcast %0 : f32 to vector<4x512xf32>
    %12 = arith.mulf %11, %5 : vector<4x512xf32>
    %13 = arith.addf %10, %12 : vector<4x512xf32>
    %14 = arith.mulf %1, %4 : vector<4x512xf32>
    %15 = arith.mulf %2, %3 : vector<4x512xf32>
    %16 = arith.addf %14, %15 : vector<4x512xf32>
    %17 = vector.broadcast %0 : f32 to vector<4x512xf32>
    %18 = arith.mulf %17, %6 : vector<4x512xf32>
    %19 = arith.addf %16, %18 : vector<4x512xf32>
    %20 = vector.broadcast %0 : f32 to vector<4x512xf32>
    %21 = arith.addf %7, %20 : vector<4x512xf32>
    %22 = tpu.reciprocal %21 : vector<4x512xf32> -> vector<4x512xf32>
    %23 = arith.mulf %13, %22 : vector<4x512xf32>
    %c0_15 = arith.constant 0 : index
    %c0_16 = arith.constant 0 : index
    %24 = vector.load %arg9[%c0_15, %c0_16] : memref<4x512xf32, #tpu.memory_space<vmem>>, vector<4x512xf32>
    tpu.vector_store %arg9[%c0_15, %c0_16], %23 {strides = array<i32>} : memref<4x512xf32, #tpu.memory_space<vmem>>, vector<4x512xf32>,
    %25 = arith.mulf %19, %22 : vector<4x512xf32>
    %c0_17 = arith.constant 0 : index
    %c0_18 = arith.constant 0 : index
    %26 = vector.load %arg10[%c0_17, %c0_18] : memref<4x512xf32, #tpu.memory_space<vmem>>, vector<4x512xf32>
    tpu.vector_store %arg10[%c0_17, %c0_18], %25 {strides = array<i32>} : memref<4x512xf32, #tpu.memory_space<vmem>>, vector<4x512xf32>,
    return
  }
  func.func @transform_0(%arg0: i32) -> (i32, i32) {
    %c0_i32 = arith.constant 0 : i32
    %c0_i32_0 = arith.constant 0 : i32
    %c0_i32_1 = arith.constant 0 : i32
    return %c0_i32, %c0_i32_0 : i32, i32
  }
  func.func @transform_1(%arg0: i32) -> (i32, i32) {
    %c0_i32 = arith.constant 0 : i32
    %c0_i32_0 = arith.constant 0 : i32
    return %arg0, %c0_i32 : i32, i32
  }
  func.func @transform_2(%arg0: i32) -> (i32, i32) {
    %c0_i32 = arith.constant 0 : i32
    %c0_i32_0 = arith.constant 0 : i32
    return %arg0, %c0_i32 : i32, i32
  }
  func.func @transform_3(%arg0: i32) -> (i32, i32) {
    %c0_i32 = arith.constant 0 : i32
    %c0_i32_0 = arith.constant 0 : i32
    return %arg0, %c0_i32 : i32, i32
  }
  func.func @transform_4(%arg0: i32) -> (i32, i32) {
    %c0_i32 = arith.constant 0 : i32
    %c0_i32_0 = arith.constant 0 : i32
    return %arg0, %c0_i32 : i32, i32
  }
  func.func @transform_5(%arg0: i32) -> (i32, i32) {
    %c0_i32 = arith.constant 0 : i32
    %c0_i32_0 = arith.constant 0 : i32
    return %arg0, %c0_i32 : i32, i32
  }
  func.func @transform_6(%arg0: i32) -> (i32, i32) {
    %c0_i32 = arith.constant 0 : i32
    %c0_i32_0 = arith.constant 0 : i32
    return %arg0, %c0_i32 : i32, i32
  }
  func.func @transform_7(%arg0: i32) -> (i32, i32) {
    %c0_i32 = arith.constant 0 : i32
    %c0_i32_0 = arith.constant 0 : i32
    return %arg0, %c0_i32 : i32, i32
  }
  func.func @transform_8(%arg0: i32) -> (i32, i32) {
    %c0_i32 = arith.constant 0 : i32
    %c0_i32_0 = arith.constant 0 : i32
    return %arg0, %c0_i32 : i32, i32
  }
  func.func @transform_9(%arg0: i32) -> (i32, i32) {
    %c0_i32 = arith.constant 0 : i32
    %c0_i32_0 = arith.constant 0 : i32
    return %arg0, %c0_i32 : i32, i32
  }
}

</mosaic_0001>

<llo_original>
// kernel: tpu_custom_call.1
$region0: #{tpu_custom_call.1}
  #allocation0 [shape = 'u32[]', space=smem, size = 0x4, offset = 0x4, fixed_abs, tag = 'smem constant byte address 0x4 - core index']
  #allocation1 [shape = 'u32[144,128]{1,0:T(1,128)}', space=vmem, size = 0x12000, scoped, tag = 'internal scratch']
  #allocation2 [shape = 'f32[1,1]{1,0:T(1,128)S(6)}', space=smem, size = 0x200, scoped, tag = 'scoped memory for tpu_custom_call.1']
  %s0 = inlined_call_operand.<no memory space> [shape: f32[1,1], index: 0, kind: input, shape index: {}]
  %s1 = inlined_call_operand.hbm [shape: f32[4,512], index: 1, kind: input, shape index: {}]
  %s2 = inlined_call_operand.hbm [shape: f32[4,512], index: 2, kind: input, shape index: {}]
  %s3 = inlined_call_operand.hbm [shape: f32[4,512], index: 3, kind: input, shape index: {}]
  %s4 = inlined_call_operand.hbm [shape: f32[4,512], index: 4, kind: input, shape index: {}]
  %s5 = inlined_call_operand.vmem [shape: f32[4,512], index: 5, kind: input, shape index: {}]
  %s6 = inlined_call_operand.hbm [shape: f32[4,512], index: 6, kind: input, shape index: {}]
  %s7 = inlined_call_operand.hbm [shape: f32[4,512], index: 7, kind: input, shape index: {}]
  %s8 = inlined_call_operand.hbm [shape: f32[4,512], index: 8, kind: output, shape index: {0}]
  %s9 = inlined_call_operand.hbm [shape: f32[4,512], index: 9, kind: output, shape index: {1}]
  %10 = xla_tuple %s8, %s9
  %s11 = sld [smem:[#allocation0]]
  $region74: #{tpu_custom_call.1} parent=0
    _
  %s13 = ssub.s32 1, %s11
  %s14 = scalar_select 0, %s13, %s11
  %15 = sst [smem:[#allocation2]] %s0
  $region1: #{tpu_custom_call.1} parent=0
    #allocation3 [shape = 'u8[8192]{0}', space=vmem, size = 0x2000, scoped, tag = 'input window, operand 1, single buffered']
    #allocation4 [shape = 's32[1]{0}', space=sflag, size = 0x4, scoped, tag = 'scoped memory for tpu_custom_call.1']
    #allocation5 [shape = 's32[1]{0}', space=sflag, size = 0x4, scoped, tag = 'scoped memory for tpu_custom_call.1']
    #allocation6 [shape = 'u8[8192]{0}', space=vmem, size = 0x2000, scoped, tag = 'input window, operand 2, single buffered']
    #allocation7 [shape = 's32[1]{0}', space=sflag, size = 0x4, scoped, tag = 'scoped memory for tpu_custom_call.1']
    #allocation8 [shape = 'u8[8192]{0}', space=vmem, size = 0x2000, scoped, tag = 'input window, operand 3, single buffered']
    #allocation9 [shape = 'u8[8192]{0}', space=vmem, size = 0x2000, scoped, tag = 'input window, operand 4, single buffered']
    #allocation10 [shape = 's32[1]{0}', space=sflag, size = 0x4, scoped, tag = 'scoped memory for tpu_custom_call.1']
    #allocation11 [shape = 'u8[8192]{0}', space=vmem, size = 0x2000, scoped, tag = 'input window, operand 6, single buffered']
    #allocation12 [shape = 'u8[8192]{0}', space=vmem, size = 0x2000, scoped, tag = 'input window, operand 7, single buffered']
    #allocation13 [shape = 's32[1]{0}', space=sflag, size = 0x4, scoped, tag = 'scoped memory for tpu_custom_call.1']
    #allocation14 [shape = 'u8[8192]{0}', space=vmem, size = 0x2000, scoped, tag = 'output window, operand 0, single buffered']
    #allocation15 [shape = 'u8[8192]{0}', space=vmem, size = 0x2000, scoped, tag = 'output window, operand 1, single buffered']
    #allocation16 [shape = 's32[1]{0}', space=sflag, size = 0x4, scoped, tag = 'scoped memory for tpu_custom_call.1']
    %16 = vsyncpa [#allocation4], 0
    %17 = vsyncpa [#allocation7], 0
    %18 = vsyncpa [#allocation10], 0
    %19 = vsyncpa [#allocation13], 0
    %20 = vsyncpa [#allocation5], 0
    %21 = vsyncpa [#allocation16], 0
    // Predicated region
    $region2: #{tpu_custom_call.1} parent=1 // pred_check
      _
    $region3: #{tpu_custom_call.1} parent=1 // pred_check_branch
      %23 = sbr.rel (0) target = $region5
    $region4: #{tpu_custom_call.1} parent=1 // pred_region
      _
    $region5: #{tpu_custom_call.1} parent=1 // pred_fallthru
      _
    // Predicated region
    $region6: #{tpu_custom_call.1} parent=1 // pred_check
      _
    $region7: #{tpu_custom_call.1} parent=1 // pred_check_branch
      %25 = sbr.rel (0) target = $region9
    $region8: #{tpu_custom_call.1} parent=1 // pred_region
      %s27 = ssub.s32 256, 256
      %28 = vsyncadd [#allocation4], %s27
      %s30 = sshll.u32 [#allocation3], 4
      %s31 = int_to_ptr.vmem [resolvable:$true] %s30
      %33 = dma.hbm_to_vmem [thread:$0]  %s1, 256, %s31, [#allocation4]
    $region9: #{tpu_custom_call.1} parent=1 // pred_fallthru
      _
    // Predicated region
    $region10: #{tpu_custom_call.1} parent=1 // pred_check
      _
    $region11: #{tpu_custom_call.1} parent=1 // pred_check_branch
      %35 = sbr.rel (0) target = $region13
    $region12: #{tpu_custom_call.1} parent=1 // pred_region
      %s37 = ssub.s32 256, 256
      %38 = vsyncadd [#allocation7], %s37
      %s40 = sshll.u32 [#allocation6], 4
      %s41 = int_to_ptr.vmem [resolvable:$true] %s40
      %43 = dma.hbm_to_vmem [thread:$0]  %s2, 256, %s41, [#allocation7]
    $region13: #{tpu_custom_call.1} parent=1 // pred_fallthru
      _
    // Predicated region
    $region14: #{tpu_custom_call.1} parent=1 // pred_check
      _
    $region15: #{tpu_custom_call.1} parent=1 // pred_check_branch
      %45 = sbr.rel (0) target = $region17
    $region16: #{tpu_custom_call.1} parent=1 // pred_region
      %s47 = ssub.s32 256, 256
      %48 = vsyncadd [#allocation7], %s47
      %s50 = sshll.u32 [#allocation8], 4
      %s51 = int_to_ptr.vmem [resolvable:$true] %s50
      %53 = dma.hbm_to_vmem [thread:$0]  %s3, 256, %s51, [#allocation7]
    $region17: #{tpu_custom_call.1} parent=1 // pred_fallthru
      _
    // Predicated region
    $region18: #{tpu_custom_call.1} parent=1 // pred_check
      _
    $region19: #{tpu_custom_call.1} parent=1 // pred_check_branch
      %55 = sbr.rel (0) target = $region21
    $region20: #{tpu_custom_call.1} parent=1 // pred_region
      %s57 = ssub.s32 256, 256
      %58 = vsyncadd [#allocation10], %s57
      %s60 = sshll.u32 [#allocation9], 4
      %s61 = int_to_ptr.vmem [resolvable:$true] %s60
      %63 = dma.hbm_to_vmem [thread:$0]  %s4, 256, %s61, [#allocation10]
    $region21: #{tpu_custom_call.1} parent=1 // pred_fallthru
      _
    // Predicated region
    $region22: #{tpu_custom_call.1} parent=1 // pred_check
      _
    $region23: #{tpu_custom_call.1} parent=1 // pred_check_branch
      %65 = sbr.rel (0) target = $region25
    $region24: #{tpu_custom_call.1} parent=1 // pred_region
      _
    $region25: #{tpu_custom_call.1} parent=1 // pred_fallthru
      _
    // Predicated region
    $region26: #{tpu_custom_call.1} parent=1 // pred_check
      _
    $region27: #{tpu_custom_call.1} parent=1 // pred_check_branch
      %67 = sbr.rel (0) target = $region29
    $region28: #{tpu_custom_call.1} parent=1 // pred_region
      %s69 = ssub.s32 256, 256
      %70 = vsyncadd [#allocation10], %s69
      %s72 = sshll.u32 [#allocation11], 4
      %s73 = int_to_ptr.vmem [resolvable:$true] %s72
      %75 = dma.hbm_to_vmem [thread:$0]  %s6, 256, %s73, [#allocation10]
    $region29: #{tpu_custom_call.1} parent=1 // pred_fallthru
      _
    // Predicated region
    $region30: #{tpu_custom_call.1} parent=1 // pred_check
      _
    $region31: #{tpu_custom_call.1} parent=1 // pred_check_branch
      %77 = sbr.rel (0) target = $region33
    $region32: #{tpu_custom_call.1} parent=1 // pred_region
      %s79 = ssub.s32 256, 256
      %80 = vsyncadd [#allocation13], %s79
      %s82 = sshll.u32 [#allocation12], 4
      %s83 = int_to_ptr.vmem [resolvable:$true] %s82
      %85 = dma.hbm_to_vmem [thread:$0]  %s7, 256, %s83, [#allocation13]
    $region33: #{tpu_custom_call.1} parent=1 // pred_fallthru
      _
    // Predicated region
    $region34: #{tpu_custom_call.1} parent=1 // pred_check
      _
    $region35: #{tpu_custom_call.1} parent=1 // pred_check_branch
      %87 = sbr.rel (0) target = $region37
    $region36: #{tpu_custom_call.1} parent=1 // pred_region
      %88 = dma.done [#allocation4], 256
    $region37: #{tpu_custom_call.1} parent=1 // pred_fallthru
      _
    // Predicated region
    $region38: #{tpu_custom_call.1} parent=1 // pred_check
      _
    $region39: #{tpu_custom_call.1} parent=1 // pred_check_branch
      %90 = sbr.rel (0) target = $region41
    $region40: #{tpu_custom_call.1} parent=1 // pred_region
      %91 = dma.done [#allocation7], 256
    $region41: #{tpu_custom_call.1} parent=1 // pred_fallthru
      _
    // Predicated region
    $region42: #{tpu_custom_call.1} parent=1 // pred_check
      _
    $region43: #{tpu_custom_call.1} parent=1 // pred_check_branch
      %93 = sbr.rel (0) target = $region45
    $region44: #{tpu_custom_call.1} parent=1 // pred_region
      %94 = dma.done [#allocation7], 256
    $region45: #{tpu_custom_call.1} parent=1 // pred_fallthru
      _
    // Predicated region
    $region46: #{tpu_custom_call.1} parent=1 // pred_check
      _
    $region47: #{tpu_custom_call.1} parent=1 // pred_check_branch
      %96 = sbr.rel (0) target = $region49
    $region48: #{tpu_custom_call.1} parent=1 // pred_region
      %97 = dma.done [#allocation10], 256
    $region49: #{tpu_custom_call.1} parent=1 // pred_fallthru
      _
    // Predicated region
    $region50: #{tpu_custom_call.1} parent=1 // pred_check
      _
    $region51: #{tpu_custom_call.1} parent=1 // pred_check_branch
      %99 = sbr.rel (0) target = $region53
    $region52: #{tpu_custom_call.1} parent=1 // pred_region
      %100 = dma.done [#allocation10], 256
    $region53: #{tpu_custom_call.1} parent=1 // pred_fallthru
      _
    // Predicated region
    $region54: #{tpu_custom_call.1} parent=1 // pred_check
      _
    $region55: #{tpu_custom_call.1} parent=1 // pred_check_branch
      %102 = sbr.rel (0) target = $region57
    $region56: #{tpu_custom_call.1} parent=1 // pred_region
      %103 = dma.done [#allocation13], 256
    $region57: #{tpu_custom_call.1} parent=1 // pred_fallthru
      _
    %s104 = sld [smem:[#allocation2]]
    %v105 = vld [vmem:[#allocation3] sm:$0xff]
    %v106 = vld [vmem:[#allocation3 + $0x8] sm:$0xff]
    %v107 = vld [vmem:[#allocation6] sm:$0xff]
    %v108 = vld [vmem:[#allocation6 + $0x8] sm:$0xff]
    %v109 = vld [vmem:[#allocation8] sm:$0xff]
    %v110 = vld [vmem:[#allocation8 + $0x8] sm:$0xff]
    %v111 = vld [vmem:[#allocation9] sm:$0xff]
    %v112 = vld [vmem:[#allocation9 + $0x8] sm:$0xff]
    %v113 = vld [vmem:[%s5] sm:$0xff]
    %v114 = vld [vmem:[%s5 + $0x8] sm:$0xff]
    %v115 = vld [vmem:[#allocation11] sm:$0xff]
    %v116 = vld [vmem:[#allocation11 + $0x8] sm:$0xff]
    %v117 = vld [vmem:[#allocation12] sm:$0xff]
    %v118 = vld [vmem:[#allocation12 + $0x8] sm:$0xff]
    %v119 = vmul.f32 %v105, %v109
    %v120 = vmul.f32 %v106, %v110
    %v121 = vmul.f32 %v107, %v111
    %v122 = vmul.f32 %v108, %v112
    %v123 = vsub.f32 %v119, %v121
    %v124 = vsub.f32 %v120, %v122
    %v125 = vstv %s104
    %v126 = vmul.f32 %v125, %v113
    %v127 = vmul.f32 %v125, %v114
    %v128 = vadd.f32 %v123, %v126
    %v129 = vadd.f32 %v124, %v127
    %v130 = vmul.f32 %v105, %v111
    %v131 = vmul.f32 %v106, %v112
    %v132 = vmul.f32 %v107, %v109
    %v133 = vmul.f32 %v108, %v110
    %v134 = vadd.f32 %v130, %v132
    %v135 = vadd.f32 %v131, %v133
    %v136 = vmul.f32 %v125, %v115
    %v137 = vmul.f32 %v125, %v116
    %v138 = vadd.f32 %v134, %v136
    %v139 = vadd.f32 %v135, %v137
    %v140 = vadd.f32 %v117, %v125
    %v141 = vadd.f32 %v118, %v125
    %v142 = vrcp.pop %v140
    %v143 = vrcp.pop %v141
    %v144 = vmul.f32 %v128, %v142
    %v145 = vmul.f32 %v129, %v143
    %146 = vst [vmem:[#allocation14] sm:$0xff] %v144
    %147 = vst [vmem:[#allocation14 + $0x8] sm:$0xff] %v145
    %v148 = vmul.f32 %v138, %v142
    %v149 = vmul.f32 %v139, %v143
    %150 = vst [vmem:[#allocation15] sm:$0xff] %v148
    %151 = vst [vmem:[#allocation15 + $0x8] sm:$0xff] %v149
    // Predicated region
    $region58: #{tpu_custom_call.1} parent=1 // pred_check
      _
    $region59: #{tpu_custom_call.1} parent=1 // pred_check_branch
      %153 = sbr.rel (0) target = $region61
    $region60: #{tpu_custom_call.1} parent=1 // pred_region
      %s155 = ssub.s32 256, 256
      %156 = vsyncadd [#allocation5], %s155
      %s158 = sshll.u32 [#allocation14], 4
      %s159 = int_to_ptr.vmem [resolvable:$true] %s158
      %161 = dma.vmem_to_hbm [thread:$0]  %s159, 256, %s8, [#allocation5]
    $region61: #{tpu_custom_call.1} parent=1 // pred_fallthru
      _
    // Predicated region
    $region62: #{tpu_custom_call.1} parent=1 // pred_check
      _
    $region63: #{tpu_custom_call.1} parent=1 // pred_check_branch
      %163 = sbr.rel (0) target = $region65
    $region64: #{tpu_custom_call.1} parent=1 // pred_region
      %s165 = ssub.s32 256, 256
      %166 = vsyncadd [#allocation16], %s165
      %s168 = sshll.u32 [#allocation15], 4
      %s169 = int_to_ptr.vmem [resolvable:$true] %s168
      %171 = dma.vmem_to_hbm [thread:$0]  %s169, 256, %s9, [#allocation16]
    $region65: #{tpu_custom_call.1} parent=1 // pred_fallthru
      _
    // Predicated region
    $region66: #{tpu_custom_call.1} parent=1 // pred_check
      _
    $region67: #{tpu_custom_call.1} parent=1 // pred_check_branch
      %173 = sbr.rel (0) target = $region69
    $region68: #{tpu_custom_call.1} parent=1 // pred_region
      %174 = dma.done [#allocation5], 256
    $region69: #{tpu_custom_call.1} parent=1 // pred_fallthru
      _
    // Predicated region
    $region70: #{tpu_custom_call.1} parent=1 // pred_check
      _
    $region71: #{tpu_custom_call.1} parent=1 // pred_check_branch
      %176 = sbr.rel (0) target = $region73
    $region72: #{tpu_custom_call.1} parent=1 // pred_region
      %177 = dma.done [#allocation16], 256
    $region73: #{tpu_custom_call.1} parent=1 // pred_fallthru
      _
    %178 = vsyncpa [#allocation4], 1
    %179 = vsyncpa [#allocation7], 1
    %180 = vsyncpa [#allocation10], 1
    %181 = vsyncpa [#allocation13], 1
    %182 = vsyncpa [#allocation5], 1
    %183 = vsyncpa [#allocation16], 1

</llo_original>
